<compile_context>
chip_gen: v7x
topology: tpu7x:2x2x1
jax: 0.10.0
libtpu: 0.0.40
codegen_flags: <defaults>
</compile_context>

<pallas_src>
import functools

import jax
import jax.numpy as jnp
from jax import lax
from jax.experimental import pallas as pl
from jax.experimental.pallas import tpu as pltpu


def _mlp_heads_kernel(x_ref, w1_ref, b1_ref, w2t_ref, b2_ref, o_ref):
    # x_ref:   (TB, F)    batch tile of backbone features (streamed)
    # w1_ref:  (F, H*D)   all heads' fc1 weights, bf16 (grid-invariant)
    # b1_ref:  (1, H*D)   fc1 biases, f32
    # w2t_ref: (H, H*D)   block-diagonal fc2 weights, bf16 (transposed layout)
    # b2_ref:  (H, 1)     fc2 biases, f32
    # o_ref:   (H, TB)    transposed output tile (lane dim = batch tile)
    x = x_ref[...].astype(w1_ref.dtype)                       # in-kernel bf16 cast
    h = jnp.dot(x, w1_ref[...],
                preferred_element_type=jnp.float32)           # MXU, f32 acc (TB, HD)
    h = jnp.maximum(h + b1_ref[...], 0.0)                     # bias + ReLU (VPU, f32)
    out_t = lax.dot_general(                                  # (H, HD) x (TB, HD) -> (H, TB)
        w2t_ref[...], h.astype(w2t_ref.dtype),
        dimension_numbers=(((1,), (1,)), ((), ())),
        preferred_element_type=jnp.float32)
    o_ref[...] = (out_t + b2_ref[...]).astype(o_ref.dtype)


@functools.partial(jax.jit, static_argnames=("block_b",))
def mlp_layer_forward(feats, w1, b1, w2, b2, *, block_b=512):
    """feats: (B, F) backbone output.
    w1: (H, D, F), b1: (H, D)   -- per-head fc1 in PyTorch (out, in) layout
    w2: (H, 1, D), b2: (H, 1)   -- per-head fc2 in PyTorch (out, in) layout
    returns (B, H) == torch.cat([head(feats) for head in heads], dim=1)
    """
    B, F = feats.shape
    H, D, _ = w1.shape
    HD = H * D

    # --- fold all heads into one fused pair of matmul weights (tiny, one-off glue)
    # layer 1: w1_cat[f, h*D + d] = w1[h, d, f]
    w1_cat = jnp.transpose(w1, (2, 0, 1)).reshape(F, HD).astype(jnp.bfloat16)
    b1_cat = b1.reshape(1, HD).astype(jnp.float32)
    # layer 2 (transposed, block-diagonal): w2t[h', h*D + d] = w2[h, 0, d] * (h == h')
    eye = jnp.eye(H, dtype=jnp.float32)
    w2t = (eye[:, :, None] * w2.reshape(H, D)[None, :, :]) \
        .reshape(H, HD).astype(jnp.bfloat16)
    b2_col = b2.reshape(H, 1).astype(jnp.float32)

    # Batch tile: big (default 512, a 256-multiple for v6e/v7x MXU fill),
    # clamped to the sublane-rounded batch so tiny demo batches still work.
    tb = min(block_b, ((B + 7) // 8) * 8)
    tb = max(8, (tb // 8) * 8)
    num_tiles = pl.cdiv(B, tb)
    Bp = num_tiles * tb   # only the small (H, Bp) output is padded, never feats

    out_t = pl.pallas_call(
        _mlp_heads_kernel,
        out_shape=jax.ShapeDtypeStruct((H, Bp), feats.dtype),
        grid=(num_tiles,),
        in_specs=[
            pl.BlockSpec((tb, F), lambda i: (i, 0)),    # features (streamed; partial last block masked)
            pl.BlockSpec((F, HD), lambda i: (0, 0)),    # fc1 weights (grid-invariant)
            pl.BlockSpec((1, HD), lambda i: (0, 0)),    # fc1 bias    (grid-invariant)
            pl.BlockSpec((H, HD), lambda i: (0, 0)),    # fc2 weights (grid-invariant)
            pl.BlockSpec((H, 1), lambda i: (0, 0)),     # fc2 bias    (grid-invariant)
        ],
        out_specs=pl.BlockSpec((H, tb), lambda i: (0, i)),  # lane-dense output tile
        compiler_params=pltpu.CompilerParams(
            dimension_semantics=("parallel",),   # batch tiles -> both v7x TCs
        ),
    )(feats, w1_cat, b1_cat, w2t, b2_col)

    # Cheap layout plumbing back to the PyTorch (B, H) convention.
    return out_t[:, :B].T


def _reference(feats, w1, b1, w2, b2):
    """Plain-JAX reference matching the PyTorch forward (per-head loop + cat)."""
    H = w1.shape[0]
    outs = []
    for h in range(H):
        y = jnp.maximum(feats @ w1[h].T + b1[h], 0.0)   # Linear + ReLU
        y = y @ w2[h].T + b2[h]                          # Linear(64 -> 1)
        outs.append(y)
    return jnp.concatenate(outs, axis=1)                 # (B, H)


if __name__ == "__main__":
    # Small, module-consistent shapes: heads are Linear(F,64)->ReLU->Linear(64,1).
    batch = 16
    num_features = 32      # base_model.num_features
    hidden = 64            # fixed by the module
    out_dim = 8

    key = jax.random.PRNGKey(0)
    kx, kw1, kb1, kw2, kb2 = jax.random.split(key, 5)

    feats = jax.random.normal(kx, (batch, num_features), dtype=jnp.float32)

    # PyTorch nn.Linear default init: uniform(+-1/sqrt(fan_in)).
    bound1 = 1.0 / (num_features ** 0.5)
    bound2 = 1.0 / (hidden ** 0.5)
    w1 = jax.random.uniform(kw1, (out_dim, hidden, num_features),
                            minval=-bound1, maxval=bound1, dtype=jnp.float32)
    b1 = jax.random.uniform(kb1, (out_dim, hidden),
                            minval=-bound1, maxval=bound1, dtype=jnp.float32)
    w2 = jax.random.uniform(kw2, (out_dim, 1, hidden),
                            minval=-bound2, maxval=bound2, dtype=jnp.float32)
    b2 = jax.random.uniform(kb2, (out_dim, 1),
                            minval=-bound2, maxval=bound2, dtype=jnp.float32)

    out = mlp_layer_forward(feats, w1, b1, w2, b2)
    out = jax.block_until_ready(out)

    ref = _reference(feats, w1, b1, w2, b2)
    assert out.shape == (batch, out_dim), out.shape
    assert jnp.allclose(out, ref, atol=2e-2, rtol=2e-2), "mismatch vs reference"

    print("KERNEL_OK")
</pallas_src>

<mosaic_0001>
module attributes {stable_mosaic.version = 11 : i64} {
  func.func @_mlp_heads_kernel(%arg0: i32, %arg1: memref<16x32xf32, #tpu.memory_space<vmem>>, %arg2: memref<32x512xbf16, #tpu.memory_space<vmem>>, %arg3: memref<1x512xf32, #tpu.memory_space<vmem>>, %arg4: memref<8x512xbf16, #tpu.memory_space<vmem>>, %arg5: memref<8x1xf32, #tpu.memory_space<vmem>>, %arg6: memref<8x16xf32, #tpu.memory_space<vmem>>) attributes {dimension_semantics = [#tpu.dimension_semantics<parallel>], iteration_bounds = array<i64: 1>, scalar_prefetch = 0 : i64, scratch_operands = 0 : i64, tpu.core_type = #tpu.core_type<tc>, window_params = [{transform_indices = @transform_0, window_bounds = array<i64: 16, 32>}, {pipeline_mode = #tpu.pipeline_mode<synchronous>, transform_indices = @transform_1, window_bounds = array<i64: 32, 512>}, {pipeline_mode = #tpu.pipeline_mode<synchronous>, transform_indices = @transform_2, window_bounds = array<i64: 1, 512>}, {pipeline_mode = #tpu.pipeline_mode<synchronous>, transform_indices = @transform_3, window_bounds = array<i64: 8, 512>}, {pipeline_mode = #tpu.pipeline_mode<synchronous>, transform_indices = @transform_4, window_bounds = array<i64: 8, 1>}, {transform_indices = @transform_5, window_bounds = array<i64: 8, 16>}]} {
    %c0 = arith.constant 0 : index
    %c0_0 = arith.constant 0 : index
    %0 = vector.load %arg1[%c0, %c0_0] : memref<16x32xf32, #tpu.memory_space<vmem>>, vector<16x32xf32>
    %1 = arith.truncf %0 : vector<16x32xf32> to vector<16x32xbf16>
    %c0_1 = arith.constant 0 : index
    %c0_2 = arith.constant 0 : index
    %2 = vector.load %arg2[%c0_1, %c0_2] : memref<32x512xbf16, #tpu.memory_space<vmem>>, vector<32x512xbf16>
    %cst = arith.constant dense<0.000000e+00> : vector<16x512xf32>
    %3 = tpu.matmul %1, %2, %cst {dimension_numbers = #tpu.dot_dimension_numbers<[1], [0], [0], [1], [0, 0, 1, 1], [], []>} : vector<16x32xbf16>, vector<32x512xbf16>, vector<16x512xf32> -> vector<16x512xf32>
    %c0_3 = arith.constant 0 : index
    %c0_4 = arith.constant 0 : index
    %4 = vector.load %arg3[%c0_3, %c0_4] : memref<1x512xf32, #tpu.memory_space<vmem>>, vector<1x512xf32>
    %5 = vector.broadcast %4 : vector<1x512xf32> to vector<16x512xf32>
    %6 = arith.addf %3, %5 : vector<16x512xf32>
    %cst_5 = arith.constant 0.000000e+00 : f32
    %7 = vector.broadcast %cst_5 : f32 to vector<16x512xf32>
    %8 = arith.maximumf %6, %7 : vector<16x512xf32>
    %c0_6 = arith.constant 0 : index
    %c0_7 = arith.constant 0 : index
    %9 = vector.load %arg4[%c0_6, %c0_7] : memref<8x512xbf16, #tpu.memory_space<vmem>>, vector<8x512xbf16>
    %10 = arith.truncf %8 : vector<16x512xf32> to vector<16x512xbf16>
    %cst_8 = arith.constant dense<0.000000e+00> : vector<8x16xf32>
    %11 = tpu.matmul %9, %10, %cst_8 {dimension_numbers = #tpu.dot_dimension_numbers<[1], [1], [0], [0], [0, 0, 1, 0], [], []>} : vector<8x512xbf16>, vector<16x512xbf16>, vector<8x16xf32> -> vector<8x16xf32>
    %c0_9 = arith.constant 0 : index
    %c0_10 = arith.constant 0 : index
    %12 = vector.load %arg5[%c0_9, %c0_10] : memref<8x1xf32, #tpu.memory_space<vmem>>, vector<8x1xf32>
    %13 = vector.broadcast %12 : vector<8x1xf32> to vector<8x16xf32>
    %14 = arith.addf %11, %13 : vector<8x16xf32>
    %c0_11 = arith.constant 0 : index
    %c0_12 = arith.constant 0 : index
    %15 = vector.load %arg6[%c0_11, %c0_12] : memref<8x16xf32, #tpu.memory_space<vmem>>, vector<8x16xf32>
    tpu.vector_store %arg6[%c0_11, %c0_12], %14 {strides = array<i32>} : memref<8x16xf32, #tpu.memory_space<vmem>>, vector<8x16xf32>,
    return
  }
  func.func @transform_0(%arg0: i32) -> (i32, i32) {
    %c0_i32 = arith.constant 0 : i32
    %c0_i32_0 = arith.constant 0 : i32
    return %arg0, %c0_i32 : i32, i32
  }
  func.func @transform_1(%arg0: i32) -> (i32, i32) {
    %c0_i32 = arith.constant 0 : i32
    %c0_i32_0 = arith.constant 0 : i32
    %c0_i32_1 = arith.constant 0 : i32
    return %c0_i32, %c0_i32_0 : i32, i32
  }
  func.func @transform_2(%arg0: i32) -> (i32, i32) {
    %c0_i32 = arith.constant 0 : i32
    %c0_i32_0 = arith.constant 0 : i32
    %c0_i32_1 = arith.constant 0 : i32
    return %c0_i32, %c0_i32_0 : i32, i32
  }
  func.func @transform_3(%arg0: i32) -> (i32, i32) {
    %c0_i32 = arith.constant 0 : i32
    %c0_i32_0 = arith.constant 0 : i32
    %c0_i32_1 = arith.constant 0 : i32
    return %c0_i32, %c0_i32_0 : i32, i32
  }
  func.func @transform_4(%arg0: i32) -> (i32, i32) {
    %c0_i32 = arith.constant 0 : i32
    %c0_i32_0 = arith.constant 0 : i32
    %c0_i32_1 = arith.constant 0 : i32
    return %c0_i32, %c0_i32_0 : i32, i32
  }
  func.func @transform_5(%arg0: i32) -> (i32, i32) {
    %c0_i32 = arith.constant 0 : i32
    %c0_i32_0 = arith.constant 0 : i32
    return %c0_i32, %arg0 : i32, i32
  }
}

</mosaic_0001>

<llo_original>
// kernel: mlp_layer_forward.1
$region0: #{mlp_layer_forward.1}
  #allocation0 [shape = 'u32[]', space=smem, size = 0x4, offset = 0x4, fixed_abs, tag = 'smem constant byte address 0x4 - core index']
  #allocation1 [shape = 'u32[144,128]{1,0:T(1,128)}', space=vmem, size = 0x12000, scoped, tag = 'internal scratch']
  %s0 = inlined_call_operand.vmem [shape: f32[16,32], index: 0, kind: input, shape index: {}]
  %s1 = inlined_call_operand.vmem [shape: bf16[32,512], index: 1, kind: input, shape index: {}]
  %s2 = inlined_call_operand.vmem [shape: f32[1,512], index: 2, kind: input, shape index: {}]
  %s3 = inlined_call_operand.vmem [shape: bf16[8,512], index: 3, kind: input, shape index: {}]
  %s4 = inlined_call_operand.vmem [shape: f32[8,1], index: 4, kind: input, shape index: {}]
  %s5 = inlined_call_operand.hbm [shape: f32[8,16], index: 5, kind: output, shape index: {}]
  %s6 = sld [smem:[#allocation0]]
  $region30: #{mlp_layer_forward.1} parent=0
    _
  %s8 = ssub.s32 1, %s6
  %s9 = scalar_select 0, %s8, %s6
  $region1: #{mlp_layer_forward.1} parent=0
    #allocation2 [shape = 'u8[4096]{0}', space=vmem, size = 0x1000, scoped, tag = 'output window, operand 0, single buffered']
    #allocation3 [shape = 's32[1]{0}', space=sflag, size = 0x4, scoped, tag = 'scoped memory for mlp_layer_forward.1']
    %10 = vsyncpa [#allocation3], 0
    // Predicated region
    $region2: #{mlp_layer_forward.1} parent=1 // pred_check
      _
    $region3: #{mlp_layer_forward.1} parent=1 // pred_check_branch
      %12 = sbr.rel (0) target = $region5
    $region4: #{mlp_layer_forward.1} parent=1 // pred_region
      _
    $region5: #{mlp_layer_forward.1} parent=1 // pred_fallthru
      _
    // Predicated region
    $region6: #{mlp_layer_forward.1} parent=1 // pred_check
      _
    $region7: #{mlp_layer_forward.1} parent=1 // pred_check_branch
      %14 = sbr.rel (0) target = $region9
    $region8: #{mlp_layer_forward.1} parent=1 // pred_region
      _
    $region9: #{mlp_layer_forward.1} parent=1 // pred_fallthru
      _
    // Predicated region
    $region10: #{mlp_layer_forward.1} parent=1 // pred_check
      _
    $region11: #{mlp_layer_forward.1} parent=1 // pred_check_branch
      %16 = sbr.rel (0) target = $region13
    $region12: #{mlp_layer_forward.1} parent=1 // pred_region
      _
    $region13: #{mlp_layer_forward.1} parent=1 // pred_fallthru
      _
    // Predicated region
    $region14: #{mlp_layer_forward.1} parent=1 // pred_check
      _
    $region15: #{mlp_layer_forward.1} parent=1 // pred_check_branch
      %18 = sbr.rel (0) target = $region17
    $region16: #{mlp_layer_forward.1} parent=1 // pred_region
      _
    $region17: #{mlp_layer_forward.1} parent=1 // pred_fallthru
      _
    // Predicated region
    $region18: #{mlp_layer_forward.1} parent=1 // pred_check
      _
    $region19: #{mlp_layer_forward.1} parent=1 // pred_check_branch
      %20 = sbr.rel (0) target = $region21
    $region20: #{mlp_layer_forward.1} parent=1 // pred_region
      _
    $region21: #{mlp_layer_forward.1} parent=1 // pred_fallthru
      _
    %v22 = vld [vmem:[%s0] sm:$0xff]
    %v23 = vld [vmem:[%s0 + $0x8] sm:$0xff]
    %v24 = vpack.c.bf16 %v23, %v22
    %v25 = vld [vmem:[%s1] sm:$0xff]
    %v26 = vld [vmem:[%s1 + $0x8] sm:$0xff]
    %v27 = vld [vmem:[%s1 + $0x10] sm:$0xff]
    %v28 = vld [vmem:[%s1 + $0x18] sm:$0xff]
    %v29 = vld [vmem:[%s1 + $0x20] sm:$0xff]
    %v30 = vld [vmem:[%s1 + $0x28] sm:$0xff]
    %v31 = vld [vmem:[%s1 + $0x30] sm:$0xff]
    %v32 = vld [vmem:[%s1 + $0x38] sm:$0xff]
    %v33 = vld [vmem:[%s2] sm:$0xf]
    %v35 = vlaneseq
    %v36 = vshrl.u32 %v35, 7
    %v37 = vsub.s32 0, %v36
    %v38 = vrot.slane %v33, %v37
    %v39 = vlaneseq
    %v40 = vshrl.u32 %v39, 7
    %v41 = vsub.s32 1, %v40
    %v42 = vrot.slane %v33, %v41
    %v43 = vlaneseq
    %v44 = vshrl.u32 %v43, 7
    %v45 = vsub.s32 2, %v44
    %v46 = vrot.slane %v33, %v45
    %v47 = vlaneseq
    %v48 = vshrl.u32 %v47, 7
    %v49 = vsub.s32 3, %v48
    %v50 = vrot.slane %v33, %v49
    %v63 = vunpack.c.l.b16 %v25
    %v64 = vunpack.c.h.b16 %v25
    %v65 = vunpack.c.l.b16 %v26
    %v66 = vunpack.c.h.b16 %v26
    %v67 = vunpack.c.l.b16 %v27
    %v68 = vunpack.c.h.b16 %v27
    %v69 = vunpack.c.l.b16 %v28
    %v70 = vunpack.c.h.b16 %v28
    %v71 = vunpack.c.l.b16 %v29
    %v72 = vunpack.c.h.b16 %v29
    %v73 = vunpack.c.l.b16 %v30
    %v74 = vunpack.c.h.b16 %v30
    %v75 = vunpack.c.l.b16 %v31
    %v76 = vunpack.c.h.b16 %v31
    %v77 = vunpack.c.l.b16 %v32
    %v78 = vunpack.c.h.b16 %v32
    %v79 = vpack.c.b16 %v67, %v63
    %v80 = vpack.c.b16 %v68, %v64
    %v81 = vpack.c.b16 %v69, %v65
    %v82 = vpack.c.b16 %v70, %v66
    %v83 = vpack.c.b16 %v75, %v71
    %v84 = vpack.c.b16 %v76, %v72
    %v85 = vpack.c.b16 %v77, %v73
    %v86 = vpack.c.b16 %v78, %v74
    %vm95 = vcmask 261120
    %v97 = vsel %vm95, %v24, 0
    %99 = vmatprep.subr.bf16.mxu0 %v80
    %100 = vmatpush1.bf16.msra.mxu0 %v79
    %101 = vmatprep.subr.bf16.mxu0 %v84
    %102 = vmatpush1.bf16.msra.mxu0 %v83
    %103 = vmatprep.subr.bf16.mxu0 0
    %104 = vmatpush1.bf16.msra.mxu0 0
    %105 = vmatprep.subr.bf16.mxu0 0
    %106 = vmatpush1.bf16.msra.mxu0 0
    %107 = vmatprep.subr.bf16.mxu0 0
    %108 = vmatpush1.bf16.msra.mxu0 0
    %109 = vmatprep.subr.bf16.mxu0 0
    %110 = vmatpush1.bf16.msra.mxu0 0
    %111 = vmatprep.subr.bf16.mxu0 0
    %112 = vmatpush1.bf16.msra.mxu0 0
    %113 = vmatprep.subr.bf16.mxu0 0
    %114 = vmatpush1.bf16.msra.mxu0 0
    %115 = vmatprep.subr.bf16.mxu0 0
    %116 = vmatpush1.bf16.msra.mxu0 0
    %117 = vmatprep.subr.bf16.mxu0 0
    %118 = vmatpush1.bf16.msra.mxu0 0
    %119 = vmatprep.subr.bf16.mxu0 0
    %120 = vmatpush1.bf16.msra.mxu0 0
    %121 = vmatprep.subr.bf16.mxu0 0
    %122 = vmatpush1.bf16.msra.mxu0 0
    %123 = vmatprep.subr.bf16.mxu0 0
    %124 = vmatpush1.bf16.msra.mxu0 0
    %125 = vmatprep.subr.bf16.mxu0 0
    %126 = vmatpush1.bf16.msra.mxu0 0
    %127 = vmatprep.subr.bf16.mxu0 0
    %128 = vmatpush1.bf16.msra.mxu0 0
    %129 = vmatprep.subr.bf16.mxu0 0
    %130 = vmatpush1.bf16.msra.mxu0 0
    %131 = vmatprep.mubr.bf16.mxu0 0
    %132 = vmatmul.mubr.bf16.gmra.mrb[0].mxu0 %v97
    %v133 = vpop.f32.mrb[0].mxu0
    %v134 = vadd.f32 %v38, %v133
    %v135 = vpop.f32.mrb[0].mxu0
    %v136 = vadd.f32 %v42, %v135
    %v137 = vpop.f32.mrb[0].mxu0
    %v138 = vadd.f32 %v38, %v137
    %v139 = vpop.f32.mrb[0].mxu0
    %v140 = vadd.f32 %v42, %v139
    %141 = vdwg.mxu0
    %142 = vmatprep.subr.bf16.mxu0 %v82
    %143 = vmatpush1.bf16.msra.mxu0 %v81
    %144 = vmatprep.subr.bf16.mxu0 %v86
    %145 = vmatpush1.bf16.msra.mxu0 %v85
    %146 = vmatprep.subr.bf16.mxu0 0
    %147 = vmatpush1.bf16.msra.mxu0 0
    %148 = vmatprep.subr.bf16.mxu0 0
    %149 = vmatpush1.bf16.msra.mxu0 0
    %150 = vmatprep.subr.bf16.mxu0 0
    %151 = vmatpush1.bf16.msra.mxu0 0
    %152 = vmatprep.subr.bf16.mxu0 0
    %153 = vmatpush1.bf16.msra.mxu0 0
    %154 = vmatprep.subr.bf16.mxu0 0
    %155 = vmatpush1.bf16.msra.mxu0 0
    %156 = vmatprep.subr.bf16.mxu0 0
    %157 = vmatpush1.bf16.msra.mxu0 0
    %158 = vmatprep.subr.bf16.mxu0 0
    %159 = vmatpush1.bf16.msra.mxu0 0
    %160 = vmatprep.subr.bf16.mxu0 0
    %161 = vmatpush1.bf16.msra.mxu0 0
    %162 = vmatprep.subr.bf16.mxu0 0
    %163 = vmatpush1.bf16.msra.mxu0 0
    %164 = vmatprep.subr.bf16.mxu0 0
    %165 = vmatpush1.bf16.msra.mxu0 0
    %166 = vmatprep.subr.bf16.mxu0 0
    %167 = vmatpush1.bf16.msra.mxu0 0
    %168 = vmatprep.subr.bf16.mxu0 0
    %169 = vmatpush1.bf16.msra.mxu0 0
    %170 = vmatprep.subr.bf16.mxu0 0
    %171 = vmatpush1.bf16.msra.mxu0 0
    %172 = vmatprep.subr.bf16.mxu0 0
    %173 = vmatpush1.bf16.msra.mxu0 0
    %174 = vmatprep.mubr.bf16.mxu0 0
    %175 = vmatmul.mubr.bf16.gmra.mrb[0].mxu0 %v97
    %v176 = vpop.f32.mrb[0].mxu0
    %v177 = vadd.f32 %v46, %v176
    %v178 = vpop.f32.mrb[0].mxu0
    %v179 = vadd.f32 %v50, %v178
    %v180 = vpop.f32.mrb[0].mxu0
    %v181 = vadd.f32 %v46, %v180
    %v182 = vpop.f32.mrb[0].mxu0
    %v183 = vadd.f32 %v50, %v182
    %184 = vdwg.mxu0
    %v185 = vmax.f32 %v134, 0.0
    %v186 = vmax.f32 %v136, 0.0
    %v187 = vmax.f32 %v177, 0.0
    %v188 = vmax.f32 %v179, 0.0
    %v189 = vmax.f32 %v138, 0.0
    %v190 = vmax.f32 %v140, 0.0
    %v191 = vmax.f32 %v181, 0.0
    %v192 = vmax.f32 %v183, 0.0
    %v193 = vld [vmem:[%s3] sm:$0xff]
    %v194 = vld [vmem:[%s3 + $0x8] sm:$0xff]
    %v195 = vpack.c.bf16 %v189, %v185
    %v196 = vpack.c.bf16 %v190, %v186
    %v197 = vpack.c.bf16 %v191, %v187
    %v198 = vpack.c.bf16 %v192, %v188
    %v199 = vld [vmem:[%s4] sm:$0xff]
    %201 = vset.pattern.permute.xlu0 0
    %202 = vperm.xlu0 %201, %v199
    %v203 = vpop.permute.xlu0 %202
    %v207 = vunpack.c.l.b16 %v193
    %v208 = vunpack.c.h.b16 %v193
    %v209 = vunpack.c.l.b16 %v194
    %v210 = vunpack.c.h.b16 %v194
    %v211 = vpack.c.b16 %v207, %v207
    %v212 = vpack.c.b16 %v208, %v208
    %v213 = vpack.c.b16 %v209, %v209
    %v214 = vpack.c.b16 %v210, %v210
    %219 = vmatprep.subr.bf16.mxu0 %v196
    %220 = vmatpush1.bf16.xpose.msra.mxu0 %v195
    %221 = vmatprep.subr.bf16.mxu0 0
    %222 = vmatpush1.bf16.xpose.msra.mxu0 0
    %223 = vmatprep.subr.bf16.mxu0 0
    %224 = vmatpush1.bf16.xpose.msra.mxu0 0
    %225 = vmatprep.subr.bf16.mxu0 0
    %226 = vmatpush1.bf16.xpose.msra.mxu0 0
    %227 = vmatprep.subr.bf16.mxu0 0
    %228 = vmatpush1.bf16.xpose.msra.mxu0 0
    %229 = vmatprep.subr.bf16.mxu0 0
    %230 = vmatpush1.bf16.xpose.msra.mxu0 0
    %231 = vmatprep.subr.bf16.mxu0 0
    %232 = vmatpush1.bf16.xpose.msra.mxu0 0
    %233 = vmatprep.subr.bf16.mxu0 0
    %234 = vmatpush1.bf16.xpose.msra.mxu0 0
    %235 = vmatprep.subr.bf16.mxu0 0
    %236 = vmatpush1.bf16.xpose.msra.mxu0 0
    %237 = vmatprep.subr.bf16.mxu0 0
    %238 = vmatpush1.bf16.xpose.msra.mxu0 0
    %239 = vmatprep.subr.bf16.mxu0 0
    %240 = vmatpush1.bf16.xpose.msra.mxu0 0
    %241 = vmatprep.subr.bf16.mxu0 0
    %242 = vmatpush1.bf16.xpose.msra.mxu0 0
    %243 = vmatprep.subr.bf16.mxu0 0
    %244 = vmatpush1.bf16.xpose.msra.mxu0 0
    %245 = vmatprep.subr.bf16.mxu0 0
    %246 = vmatpush1.bf16.xpose.msra.mxu0 0
    %247 = vmatprep.subr.bf16.mxu0 0
    %248 = vmatpush1.bf16.xpose.msra.mxu0 0
    %249 = vmatprep.subr.bf16.mxu0 0
    %250 = vmatpush1.bf16.xpose.msra.mxu0 0
    %251 = vmatprep.mubr.bf16.mxu0 %v212
    %252 = vmatmul.mubr.bf16.gmra.mrb[0].mxu0 %v211
    %v253 = vpop.f32.mrb[0].mxu0
    %v254 = vadd.f32 %v203, %v253
    %v255 = vpop.f32.mrb[0].mxu0
    %v256 = vpop.f32.mrb[0].mxu0
    %v257 = vpop.f32.mrb[0].mxu0
    %258 = vdwg.mxu0
    %259 = vmatprep.subr.bf16.mxu0 %v198
    %260 = vmatpush1.bf16.xpose.msra.mxu0 %v197
    %261 = vmatprep.subr.bf16.mxu0 0
    %262 = vmatpush1.bf16.xpose.msra.mxu0 0
    %263 = vmatprep.subr.bf16.mxu0 0
    %264 = vmatpush1.bf16.xpose.msra.mxu0 0
    %265 = vmatprep.subr.bf16.mxu0 0
    %266 = vmatpush1.bf16.xpose.msra.mxu0 0
    %267 = vmatprep.subr.bf16.mxu0 0
    %268 = vmatpush1.bf16.xpose.msra.mxu0 0
    %269 = vmatprep.subr.bf16.mxu0 0
    %270 = vmatpush1.bf16.xpose.msra.mxu0 0
    %271 = vmatprep.subr.bf16.mxu0 0
    %272 = vmatpush1.bf16.xpose.msra.mxu0 0
    %273 = vmatprep.subr.bf16.mxu0 0
    %274 = vmatpush1.bf16.xpose.msra.mxu0 0
    %275 = vmatprep.subr.bf16.mxu0 0
    %276 = vmatpush1.bf16.xpose.msra.mxu0 0
    %277 = vmatprep.subr.bf16.mxu0 0
    %278 = vmatpush1.bf16.xpose.msra.mxu0 0
    %279 = vmatprep.subr.bf16.mxu0 0
    %280 = vmatpush1.bf16.xpose.msra.mxu0 0
    %281 = vmatprep.subr.bf16.mxu0 0
    %282 = vmatpush1.bf16.xpose.msra.mxu0 0
    %283 = vmatprep.subr.bf16.mxu0 0
    %284 = vmatpush1.bf16.xpose.msra.mxu0 0
    %285 = vmatprep.subr.bf16.mxu0 0
    %286 = vmatpush1.bf16.xpose.msra.mxu0 0
    %287 = vmatprep.subr.bf16.mxu0 0
    %288 = vmatpush1.bf16.xpose.msra.mxu0 0
    %289 = vmatprep.subr.bf16.mxu0 0
    %290 = vmatpush1.bf16.xpose.msra.mxu0 0
    %291 = vmatprep.mubr.bf16.mxu0 %v214
    %292 = vmatmul.mubr.bf16.gmra.mrb[0].mxu0 %v213
    %v293 = vpop.f32.mrb[0].mxu0
    %v294 = vadd.f32 %v254, %v293
    %v295 = vpop.f32.mrb[0].mxu0
    %v296 = vpop.f32.mrb[0].mxu0
    %v297 = vpop.f32.mrb[0].mxu0
    %298 = vdwg.mxu0
    %vm299 = vcmask 130048
    %300 = vst.msk [vmem:[#allocation2] sm:$0xff] %vm299, %v294
    // Predicated region
    $region22: #{mlp_layer_forward.1} parent=1 // pred_check
      _
    $region23: #{mlp_layer_forward.1} parent=1 // pred_check_branch
      %302 = sbr.rel (0) target = $region25
    $region24: #{mlp_layer_forward.1} parent=1 // pred_region
      %s304 = ssub.s32 128, 128
      %305 = vsyncadd [#allocation3], %s304
      %s307 = sshll.u32 [#allocation2], 4
      %s308 = int_to_ptr.vmem [resolvable:$true] %s307
      %310 = dma.vmem_to_hbm [thread:$0]  %s308, 128, %s5, [#allocation3]
    $region25: #{mlp_layer_forward.1} parent=1 // pred_fallthru
      _
    // Predicated region
    $region26: #{mlp_layer_forward.1} parent=1 // pred_check
      _
    $region27: #{mlp_layer_forward.1} parent=1 // pred_check_branch
      %312 = sbr.rel (0) target = $region29
    $region28: #{mlp_layer_forward.1} parent=1 // pred_region
      %313 = dma.done [#allocation3], 128
    $region29: #{mlp_layer_forward.1} parent=1 // pred_fallthru
      _
    %314 = vsyncpa [#allocation3], 1

</llo_original>
